<compile_context>
chip_gen: v6e
topology: v6e:2x2x1
jax: 0.10.0
libtpu: 0.0.40
codegen_flags: <defaults>
</compile_context>

<pallas_src>
import functools

import jax
import jax.numpy as jnp
from jax import lax
from jax.experimental import pallas as pl
from jax.experimental.pallas import tpu as pltpu

_MIB = 1024 * 1024


def _ceil_to(x, m):
    return -(-x // m) * m


def _vmem_capacity_bytes():
    """Physical per-core VMEM; conservative 64 MiB (v7x) if the query fails."""
    try:
        info = pltpu.get_tpu_info()
        for name in ("vmem_capacity_bytes", "vmem_size_bytes", "vmem_bytes"):
            v = getattr(info, name, None)
            if v:
                return int(v)
    except Exception:
        pass
    return 64 * _MIB


# ----------------------------------------------------------------------------
# Fused single-pass kernel: the whole (bt, C, HW) slab is resident in VMEM.
# ----------------------------------------------------------------------------
def _fused_kernel(x_ref, w1_ref, w2_ref, o_ref, *, hw_chunk, n_full, tail, unroll):
    Bt, C, HW = x_ref.shape

    # --- squeeze: lane-dense chunks, per-chunk XLU reduce into a (Bt, C) acc ---
    def chunk_max(i):
        start = pl.multiple_of(i * hw_chunk, hw_chunk)
        xc = x_ref[:, :, pl.ds(start, hw_chunk)].astype(jnp.float32)
        return jnp.max(xc, axis=-1)                                # (Bt, C)

    if n_full > 0:
        y = lax.fori_loop(1, n_full,
                          lambda i, acc: jnp.maximum(acc, chunk_max(i)),
                          chunk_max(0), unroll=unroll)
    else:
        y = jnp.full((Bt, C), -jnp.inf, dtype=jnp.float32)
    if tail > 0:
        xt = x_ref[:, :, pl.ds(n_full * hw_chunk, tail)].astype(jnp.float32)
        y = jnp.maximum(y, jnp.max(xt, axis=-1))

    # --- excitation: tiny MXU matmuls, hidden under the next tile's DMA ---
    h = jnp.maximum(
        jnp.dot(y, w1_ref[...].astype(jnp.float32),
                preferred_element_type=jnp.float32), 0.0)
    s = jax.nn.sigmoid(
        jnp.dot(h, w2_ref[...].astype(jnp.float32),
                preferred_element_type=jnp.float32))               # (Bt, C)

    # --- scale: re-read x per chunk, unmasked stores for the bulk chunks ---
    if n_full > 0:
        s_b = jnp.broadcast_to(s[:, :, None], (Bt, C, hw_chunk))   # hoisted

        def scale_body(i, carry):
            start = pl.multiple_of(i * hw_chunk, hw_chunk)
            xc = x_ref[:, :, pl.ds(start, hw_chunk)].astype(jnp.float32)
            o_ref[:, :, pl.ds(start, hw_chunk)] = (xc * s_b).astype(o_ref.dtype)
            return carry

        lax.fori_loop(0, n_full, scale_body, 0, unroll=unroll)
    if tail > 0:
        ts = n_full * hw_chunk
        xt = x_ref[:, :, pl.ds(ts, tail)].astype(jnp.float32)
        o_ref[:, :, pl.ds(ts, tail)] = (xt * s[:, :, None]).astype(o_ref.dtype)


# ----------------------------------------------------------------------------
# Two-phase fallback kernel: HW is a second grid axis of length 2 * n_hw.
#   t <  n_hw : max-reduce phase (resident (bt, C) accumulator)
#   t == n_hw : excitation (once per batch tile)
#   t >= n_hw : scale phase (re-reads the same HW blocks)
# ----------------------------------------------------------------------------
def _two_phase_kernel(x_ref, w1_ref, w2_ref, o_ref, y_acc, s_ref,
                      *, n_hw, hw_blk, hw_total):
    t = pl.program_id(1)

    @pl.when(t == 0)
    def _():
        y_acc[...] = jnp.full(y_acc.shape, -jnp.inf, dtype=y_acc.dtype)

    @pl.when(t < n_hw)
    def _():
        xc = x_ref[...].astype(jnp.float32)                        # (bt, C, hw_blk)
        if hw_total % hw_blk != 0:
            # mask padded lanes of the ragged last HW block with -inf
            pos = t * hw_blk + lax.broadcasted_iota(jnp.int32, xc.shape, 2)
            xc = jnp.where(pos < hw_total, xc, -jnp.inf)
        y_acc[...] = jnp.maximum(y_acc[...], jnp.max(xc, axis=-1))

    @pl.when(t == n_hw)
    def _():
        y = y_acc[...]
        h = jnp.maximum(
            jnp.dot(y, w1_ref[...].astype(jnp.float32),
                    preferred_element_type=jnp.float32), 0.0)
        s_ref[...] = jax.nn.sigmoid(
            jnp.dot(h, w2_ref[...].astype(jnp.float32),
                    preferred_element_type=jnp.float32))

    @pl.when(t >= n_hw)
    def _():
        xc = x_ref[...].astype(jnp.float32)
        # OOB lanes of the ragged last block are dropped on writeback.
        o_ref[...] = (xc * s_ref[...][:, :, None]).astype(o_ref.dtype)


# ----------------------------------------------------------------------------
# Wrapper: tiling plan + pallas_call
# ----------------------------------------------------------------------------
def se_block(x, w1, w2, *, slab_budget_bytes=None):
    """x: (B, C, H, W); w1: (C, C//r); w2: (C//r, C)  [torch Linear weights, transposed]."""
    B, C, H, W = x.shape
    Cr = w1.shape[1]
    HW = H * W
    itemsize = x.dtype.itemsize
    x3 = x.reshape(B, C, HW)

    # Padded (8,128) VMEM footprint of one batch row of x.
    c_pad = _ceil_to(C, 8)
    hw_pad = _ceil_to(HW, 128)
    per_batch = c_pad * hw_pad * itemsize

    vmem = _vmem_capacity_bytes()
    usable = (vmem * 3) // 4                       # headroom under physical VMEM
    if slab_budget_bytes is None:
        # ~4 live x-sized buffers (2x-in + 2x-out) + temps must fit; 8 MiB is
        # already on the HBM-roofline plateau, so cap there.
        slab_budget = min(usable // 5, 8 * _MIB)
    else:
        slab_budget = slab_budget_bytes

    w_bytes = 2 * (c_pad * _ceil_to(Cr, 128) + _ceil_to(Cr, 8) * _ceil_to(C, 128)) * 4
    flops = 2 * B * C * HW + 4 * B * C * Cr
    transcendentals = B * C

    if per_batch <= slab_budget:
        # ------------------ fused single-pass path ------------------
        bt = max(1, min(B, slab_budget // per_batch))
        if B >= 2:
            bt = min(bt, pl.cdiv(B, 2))            # >= 2 grid steps -> both v7x TCs busy
        nb = pl.cdiv(B, bt)                        # ragged last batch tile is fine
        slab = bt * per_batch

        hw_chunk = 512 if HW >= 512 else 128
        n_full, tail = HW // hw_chunk, HW % hw_chunk
        kernel = functools.partial(_fused_kernel, hw_chunk=hw_chunk,
                                   n_full=n_full, tail=tail, unroll=(n_full <= 8))

        live = 4 * slab + w_bytes + 2 * bt * c_pad * hw_chunk * 4 + _MIB
        vmem_limit = int(min((vmem * 17) // 20, max(2 * live, 32 * _MIB)))

        out = pl.pallas_call(
            kernel,
            out_shape=jax.ShapeDtypeStruct((B, C, HW), x.dtype),
            grid_spec=pltpu.PrefetchScalarGridSpec(
                num_scalar_prefetch=0,
                grid=(nb,),
                in_specs=[
                    # x tile; on v7x try pipeline_mode=pl.Buffered(3) here if
                    # the profile shows inter-step DMA gaps (costs more VMEM).
                    pl.BlockSpec((bt, C, HW), lambda b: (b, 0, 0)),
                    pl.BlockSpec((C, Cr), lambda b: (0, 0)),       # w1 (resident)
                    pl.BlockSpec((Cr, C), lambda b: (0, 0)),       # w2 (resident)
                ],
                out_specs=pl.BlockSpec((bt, C, HW), lambda b: (b, 0, 0)),
            ),
            compiler_params=pltpu.CompilerParams(
                dimension_semantics=("parallel",),
                vmem_limit_bytes=vmem_limit,
            ),
            cost_estimate=pl.CostEstimate(
                flops=flops,
                transcendentals=transcendentals,
                bytes_accessed=2 * B * C * HW * itemsize,
            ),
        )(x3, w1, w2)

    else:
        # ------------------ two-phase fallback (big C*HW slabs) ------------------
        bt = 1
        if HW <= 128:
            hw_blk = HW
        else:
            hw_blk = max(128, ((slab_budget // (c_pad * itemsize)) // 128) * 128)
        n_hw = pl.cdiv(HW, hw_blk)
        slab = bt * c_pad * _ceil_to(hw_blk, 128) * itemsize

        kernel = functools.partial(_two_phase_kernel, n_hw=n_hw,
                                   hw_blk=hw_blk, hw_total=HW)

        def x_map(b, t):
            return (b, 0, jnp.where(t < n_hw, t, t - n_hw))

        def o_map(b, t):
            # Pinned to block 0 during the max phase (never written there);
            # first writeback happens after the scale step fills it.
            return (b, 0, jnp.maximum(t - n_hw, 0))

        live = 4 * slab + w_bytes + 2 * _MIB
        vmem_limit = int(min((vmem * 17) // 20, max(2 * live, 32 * _MIB)))

        out = pl.pallas_call(
            kernel,
            out_shape=jax.ShapeDtypeStruct((B, C, HW), x.dtype),
            grid_spec=pltpu.PrefetchScalarGridSpec(
                num_scalar_prefetch=0,
                grid=(pl.cdiv(B, bt), 2 * n_hw),
                in_specs=[
                    pl.BlockSpec((bt, C, hw_blk), x_map),
                    pl.BlockSpec((C, Cr), lambda b, t: (0, 0)),
                    pl.BlockSpec((Cr, C), lambda b, t: (0, 0)),
                ],
                out_specs=pl.BlockSpec((bt, C, hw_blk), o_map),
                scratch_shapes=[
                    pltpu.VMEM((bt, C), jnp.float32),   # y accumulator
                    pltpu.VMEM((bt, C), jnp.float32),   # s (per-channel scale)
                ],
            ),
            compiler_params=pltpu.CompilerParams(
                dimension_semantics=("parallel", "arbitrary"),
                vmem_limit_bytes=vmem_limit,
            ),
            cost_estimate=pl.CostEstimate(
                flops=flops,
                transcendentals=transcendentals,
                bytes_accessed=3 * B * C * HW * itemsize,   # extra read of x
            ),
        )(x3, w1, w2)

    return out.reshape(B, C, H, W)


def se_block_ref(x, w1, w2):
    """Pure-JAX reference matching the PyTorch module."""
    y = jnp.max(x, axis=(2, 3))                       # (B, C)
    h = jnp.maximum(y @ w1, 0.0)                      # (B, C//r)
    s = jax.nn.sigmoid(h @ w2)                        # (B, C)
    return x * s[:, :, None, None]


if __name__ == "__main__":
    key = jax.random.PRNGKey(0)
    kx, k1, k2, kx2, kx3 = jax.random.split(key, 5)

    C, ratio = 8, 4
    Cr = C // ratio
    # Weights stored as (in, out), i.e. torch nn.Linear weight transposed.
    w1 = jax.random.normal(k1, (C, Cr), dtype=jnp.float32) * (1.0 / jnp.sqrt(C))
    w2 = jax.random.normal(k2, (Cr, C), dtype=jnp.float32) * (1.0 / jnp.sqrt(Cr))

    # --- Test 1: fused single-pass path (common case) ---
    x = jax.random.normal(kx, (2, C, 16, 16), dtype=jnp.float32)
    out = jax.block_until_ready(se_block(x, w1, w2))
    ref = se_block_ref(x, w1, w2)
    assert out.shape == x.shape
    assert jnp.allclose(out, ref, atol=1e-5, rtol=1e-5), "fused path mismatch"

    # --- Test 2: fused path with a ragged last batch tile (B=3, bt=2) ---
    x2 = jax.random.normal(kx2, (3, C, 16, 16), dtype=jnp.float32)
    out2 = jax.block_until_ready(se_block(x2, w1, w2))
    ref2 = se_block_ref(x2, w1, w2)
    assert jnp.allclose(out2, ref2, atol=1e-5, rtol=1e-5), "ragged batch mismatch"

    # --- Test 3: two-phase fallback (forced via a tiny slab budget),
    #     HW = 14*14 = 196 -> ragged, masked last HW block ---
    x3 = jax.random.normal(kx3, (2, C, 14, 14), dtype=jnp.float32)
    out3 = jax.block_until_ready(se_block(x3, w1, w2, slab_budget_bytes=4096))
    ref3 = se_block_ref(x3, w1, w2)
    assert jnp.allclose(out3, ref3, atol=1e-5, rtol=1e-5), "two-phase path mismatch"

    print("KERNEL_OK")
</pallas_src>

<mosaic_0001>
module attributes {stable_mosaic.version = 11 : i64} {
  func.func @_fused_kernel(%arg0: i32, %arg1: memref<1x8x256xf32, #tpu.memory_space<vmem>>, %arg2: memref<8x2xf32, #tpu.memory_space<vmem>>, %arg3: memref<2x8xf32, #tpu.memory_space<vmem>>, %arg4: memref<1x8x256xf32, #tpu.memory_space<vmem>>) attributes {dimension_semantics = [#tpu.dimension_semantics<parallel>], iteration_bounds = array<i64: 2>, scalar_prefetch = 0 : i64, scratch_operands = 0 : i64, tpu.core_type = #tpu.core_type<tc>, window_params = [{transform_indices = @transform_0, window_bounds = array<i64: 1, 8, 256>}, {pipeline_mode = #tpu.pipeline_mode<synchronous>, transform_indices = @transform_1, window_bounds = array<i64: 8, 2>}, {pipeline_mode = #tpu.pipeline_mode<synchronous>, transform_indices = @transform_2, window_bounds = array<i64: 2, 8>}, {transform_indices = @transform_3, window_bounds = array<i64: 1, 8, 256>}]} {
    %c0_i32 = arith.constant 0 : i32
    %0 = tpu.assume_multiple %c0_i32, 128 : i32
    %c0 = arith.constant 0 : index
    %c0_0 = arith.constant 0 : index
    %1 = arith.index_cast %0 : i32 to index
    %2 = vector.load %arg1[%c0, %c0_0, %1] : memref<1x8x256xf32, #tpu.memory_space<vmem>>, vector<1x8x128xf32>
    %cst = arith.constant dense<0xFF800000> : vector<1x8xf32>
    %3 = vector.multi_reduction <maximumf>, %2, %cst [2] : vector<1x8x128xf32> to vector<1x8xf32>
    %c1_i32 = arith.constant 1 : i32
    %c128_i32 = arith.constant 128 : i32
    %4 = arith.muli %c1_i32, %c128_i32 : i32
    %5 = tpu.assume_multiple %4, 128 : i32
    %c0_1 = arith.constant 0 : index
    %c0_2 = arith.constant 0 : index
    %6 = arith.index_cast %5 : i32 to index
    %7 = vector.load %arg1[%c0_1, %c0_2, %6] : memref<1x8x256xf32, #tpu.memory_space<vmem>>, vector<1x8x128xf32>
    %cst_3 = arith.constant dense<0xFF800000> : vector<1x8xf32>
    %8 = vector.multi_reduction <maximumf>, %7, %cst_3 [2] : vector<1x8x128xf32> to vector<1x8xf32>
    %9 = arith.maximumf %3, %8 : vector<1x8xf32>
    %c1_i32_4 = arith.constant 1 : i32
    %c0_5 = arith.constant 0 : index
    %c0_6 = arith.constant 0 : index
    %10 = vector.load %arg2[%c0_5, %c0_6] : memref<8x2xf32, #tpu.memory_space<vmem>>, vector<8x2xf32>
    %cst_7 = arith.constant dense<0.000000e+00> : vector<1x2xf32>
    %11 = tpu.matmul %9, %10, %cst_7 {dimension_numbers = #tpu.dot_dimension_numbers<[1], [0], [0], [1], [0, 0, 1, 1], [], []>} : vector<1x8xf32>, vector<8x2xf32>, vector<1x2xf32> -> vector<1x2xf32>
    %cst_8 = arith.constant 0.000000e+00 : f32
    %12 = vector.broadcast %cst_8 : f32 to vector<1x2xf32>
    %13 = arith.maximumf %11, %12 : vector<1x2xf32>
    %c0_9 = arith.constant 0 : index
    %c0_10 = arith.constant 0 : index
    %14 = vector.load %arg3[%c0_9, %c0_10] : memref<2x8xf32, #tpu.memory_space<vmem>>, vector<2x8xf32>
    %cst_11 = arith.constant dense<0.000000e+00> : vector<1x8xf32>
    %15 = tpu.matmul %13, %14, %cst_11 {dimension_numbers = #tpu.dot_dimension_numbers<[1], [0], [0], [1], [0, 0, 1, 1], [], []>} : vector<1x2xf32>, vector<2x8xf32>, vector<1x8xf32> -> vector<1x8xf32>
    %16 = arith.negf %15 : vector<1x8xf32>
    %17 = math.exp %16 : vector<1x8xf32>
    %cst_12 = arith.constant 1.000000e+00 : f32
    %18 = vector.broadcast %cst_12 : f32 to vector<1x8xf32>
    %19 = arith.addf %18, %17 : vector<1x8xf32>
    %20 = arith.divf %18, %19 : vector<1x8xf32>
    %21 = vector.shape_cast %20 : vector<1x8xf32> to vector<1x8x1xf32>
    %22 = vector.shape_cast %21 : vector<1x8x1xf32> to vector<1x8x1xf32>
    %23 = vector.broadcast %22 : vector<1x8x1xf32> to vector<1x8x128xf32>
    %c0_i32_13 = arith.constant 0 : i32
    %c128_i32_14 = arith.constant 128 : i32
    %24 = arith.muli %c0_i32_13, %c128_i32_14 : i32
    %25 = tpu.assume_multiple %24, 128 : i32
    %c0_15 = arith.constant 0 : index
    %c0_16 = arith.constant 0 : index
    %26 = arith.index_cast %25 : i32 to index
    %27 = vector.load %arg1[%c0_15, %c0_16, %26] : memref<1x8x256xf32, #tpu.memory_space<vmem>>, vector<1x8x128xf32>
    %28 = arith.mulf %27, %23 : vector<1x8x128xf32>
    %c0_17 = arith.constant 0 : index
    %c0_18 = arith.constant 0 : index
    %29 = arith.index_cast %25 : i32 to index
    %30 = vector.load %arg4[%c0_17, %c0_18, %29] : memref<1x8x256xf32, #tpu.memory_space<vmem>>, vector<1x8x128xf32>
    tpu.vector_store %arg4[%c0_17, %c0_18, %29], %28 {strides = array<i32>} : memref<1x8x256xf32, #tpu.memory_space<vmem>>, vector<1x8x128xf32>,
    %c1_i32_19 = arith.constant 1 : i32
    %c128_i32_20 = arith.constant 128 : i32
    %31 = arith.muli %c1_i32_19, %c128_i32_20 : i32
    %32 = tpu.assume_multiple %31, 128 : i32
    %c0_21 = arith.constant 0 : index
    %c0_22 = arith.constant 0 : index
    %33 = arith.index_cast %32 : i32 to index
    %34 = vector.load %arg1[%c0_21, %c0_22, %33] : memref<1x8x256xf32, #tpu.memory_space<vmem>>, vector<1x8x128xf32>
    %35 = arith.mulf %34, %23 : vector<1x8x128xf32>
    %c0_23 = arith.constant 0 : index
    %c0_24 = arith.constant 0 : index
    %36 = arith.index_cast %32 : i32 to index
    %37 = vector.load %arg4[%c0_23, %c0_24, %36] : memref<1x8x256xf32, #tpu.memory_space<vmem>>, vector<1x8x128xf32>
    tpu.vector_store %arg4[%c0_23, %c0_24, %36], %35 {strides = array<i32>} : memref<1x8x256xf32, #tpu.memory_space<vmem>>, vector<1x8x128xf32>,
    %c2_i32 = arith.constant 2 : i32
    return
  }
  func.func @transform_0(%arg0: i32) -> (i32, i32, i32) {
    %c0_i32 = arith.constant 0 : i32
    %c0_i32_0 = arith.constant 0 : i32
    %c0_i32_1 = arith.constant 0 : i32
    return %arg0, %c0_i32, %c0_i32_0 : i32, i32, i32
  }
  func.func @transform_1(%arg0: i32) -> (i32, i32) {
    %c0_i32 = arith.constant 0 : i32
    %c0_i32_0 = arith.constant 0 : i32
    %c0_i32_1 = arith.constant 0 : i32
    return %c0_i32, %c0_i32_0 : i32, i32
  }
  func.func @transform_2(%arg0: i32) -> (i32, i32) {
    %c0_i32 = arith.constant 0 : i32
    %c0_i32_0 = arith.constant 0 : i32
    %c0_i32_1 = arith.constant 0 : i32
    return %c0_i32, %c0_i32_0 : i32, i32
  }
  func.func @transform_3(%arg0: i32) -> (i32, i32, i32) {
    %c0_i32 = arith.constant 0 : i32
    %c0_i32_0 = arith.constant 0 : i32
    %c0_i32_1 = arith.constant 0 : i32
    return %arg0, %c0_i32, %c0_i32_0 : i32, i32, i32
  }
}

</mosaic_0001>

<llo_original>
// kernel: tpu_custom_call.1
$region0: #{tpu_custom_call.1}
  #allocation0 [shape = 'u32[]', space=smem, size = 0x4, offset = 0x4, fixed_abs, tag = 'smem constant byte address 0x4 - core index']
  #allocation1 [shape = 'u32[144,128]{1,0:T(1,128)}', space=vmem, size = 0x12000, scoped, tag = 'internal scratch']
  %s0 = inlined_call_operand.hbm [shape: f32[2,8,256], index: 0, kind: input, shape index: {}]
  %s1 = inlined_call_operand.vmem [shape: f32[8,2], index: 1, kind: input, shape index: {}]
  %s2 = inlined_call_operand.vmem [shape: f32[2,8], index: 2, kind: input, shape index: {}]
  %s3 = inlined_call_operand.hbm [shape: f32[2,8,256], index: 3, kind: output, shape index: {}]
  %s4 = sld [smem:[#allocation0]]
  $region49: #{tpu_custom_call.1} parent=0
    _
  %s6 = ssub.s32 1, %s4
  %s7 = scalar_select 0, %s6, %s4
  $region1: #{tpu_custom_call.1} parent=0
    #allocation2 [shape = 'u8[16384]{0}', space=vmem, size = 0x4000, scoped, tag = 'input window, operand 0']
    #allocation3 [shape = 's32[2]{0}', space=sflag, size = 0x8, scoped, tag = 'scoped memory for tpu_custom_call.1']
    #allocation4 [shape = 's32[2]{0}', space=sflag, size = 0x8, scoped, tag = 'scoped memory for tpu_custom_call.1']
    #allocation5 [shape = 'u8[16384]{0}', space=vmem, size = 0x4000, scoped, tag = 'output window, operand 0']
    %8 = vsyncpa [#allocation3], 0
    %s9 = scalar_lea.sflag [#allocation3], 1
    %10 = vsyncpa %s9, 0
    %11 = vsyncpa [#allocation4], 0
    %s12 = scalar_lea.sflag [#allocation4], 1
    %13 = vsyncpa %s12, 0
    loop: start=0, step=1, limit=4
    $region2: #{tpu_custom_call.1} parent=1 // loop_pre_header
      _
    $region3: #{tpu_custom_call.1} parent=1 // loop_header
      %s15 = sphi 0, %s19
      %p16 = scmp.ge.s32.totalorder %s15, 4
      %s25 = sphi 0, %s27
      %s28 = sphi 0, %s25
      %s29 = sphi 0, %s28
      %s45 = sphi 0, %s29
      %s49 = sphi 0, %s49
      %s51 = sphi 0, %s49
      %s52 = sphi 0, %s51
      %s66 = sphi 0, %s52
      %s70 = sphi 0, %s70
      %s72 = sphi 0, %s70
      %s73 = sphi 0, %s72
      %s87 = sphi 0, %s73
      %s93 = sphi 0, %s95
      %s96 = sphi 0, %s93
      %s97 = sphi 0, %s96
      %s113 = sphi 0, %s97
    $region4: #{tpu_custom_call.1} parent=1 // loop_header_branch
      %18 = sbr.rel (%p16) target = $region8
    $region5: #{tpu_custom_call.1} parent=1 // loop_body
      %s20 = ssub.s32 %s15, 1
      %s21 = ssub.s32 %s15, 2
      %s22 = sadd.s32 %s15, 1
      %s23 = ssub.s32 %s15, %s22
      %p24 = scmp.eq.s32.totalorder %s23, 0
      %s26 = sadd.s32 %s25, 1
      %s27 = scalar_select %p24, %s25, %s26
      %p30 = pneg %p24
      %p31 = scmp.eq.s32.totalorder %s15, 1
      %p32 = por %p30, %p31
      %p33 = scmp.ne.s32.totalorder %s25, %s28
      %p34 = scmp.eq.s32.totalorder %s15, 0
      %p35 = por %p33, %p34
      %p36 = scmp.ne.s32.totalorder %s25, %s28
      %p37 = scmp.eq.s32.totalorder %s20, 1
      %p38 = por %p36, %p37
      %p39 = scmp.ne.s32.totalorder %s28, %s29
      %p40 = scmp.eq.s32.totalorder %s20, 0
      %p41 = por %p39, %p40
      %p42 = scmp.ne.s32.totalorder %s28, %s29
      %p43 = scmp.eq.s32.totalorder %s21, 1
      %p44 = por %p42, %p43
      %p46 = scmp.ne.s32.totalorder %s29, %s45
      %p47 = scmp.eq.s32.totalorder %s21, 0
      %p48 = por %p46, %p47
      %s50 = sadd.s32 %s49, 1
      %p53 = scmp.eq.s32.totalorder %s15, 1
      %p54 = scmp.ne.s32.totalorder %s49, %s51
      %p55 = scmp.eq.s32.totalorder %s15, 0
      %p56 = por %p54, %p55
      %p57 = scmp.ne.s32.totalorder %s49, %s51
      %p58 = scmp.eq.s32.totalorder %s20, 1
      %p59 = por %p57, %p58
      %p60 = scmp.ne.s32.totalorder %s51, %s52
      %p61 = scmp.eq.s32.totalorder %s20, 0
      %p62 = por %p60, %p61
      %p63 = scmp.ne.s32.totalorder %s51, %s52
      %p64 = scmp.eq.s32.totalorder %s21, 1
      %p65 = por %p63, %p64
      %p67 = scmp.ne.s32.totalorder %s52, %s66
      %p68 = scmp.eq.s32.totalorder %s21, 0
      %p69 = por %p67, %p68
      %s71 = sadd.s32 %s70, 1
      %p74 = scmp.eq.s32.totalorder %s15, 1
      %p75 = scmp.ne.s32.totalorder %s70, %s72
      %p76 = scmp.eq.s32.totalorder %s15, 0
      %p77 = por %p75, %p76
      %p78 = scmp.ne.s32.totalorder %s70, %s72
      %p79 = scmp.eq.s32.totalorder %s20, 1
      %p80 = por %p78, %p79
      %p81 = scmp.ne.s32.totalorder %s72, %s73
      %p82 = scmp.eq.s32.totalorder %s20, 0
      %p83 = por %p81, %p82
      %p84 = scmp.ne.s32.totalorder %s72, %s73
      %p85 = scmp.eq.s32.totalorder %s21, 1
      %p86 = por %p84, %p85
      %p88 = scmp.ne.s32.totalorder %s73, %s87
      %p89 = scmp.eq.s32.totalorder %s21, 0
      %p90 = por %p88, %p89
      %s91 = ssub.s32 %s15, %s22
      %p92 = scmp.eq.s32.totalorder %s91, 0
      %s94 = sadd.s32 %s93, 1
      %s95 = scalar_select %p92, %s93, %s94
      %p98 = pneg %p92
      %p99 = scmp.eq.s32.totalorder %s15, 1
      %p100 = por %p98, %p99
      %p101 = scmp.ne.s32.totalorder %s93, %s96
      %p102 = scmp.eq.s32.totalorder %s15, 0
      %p103 = por %p101, %p102
      %p104 = scmp.ne.s32.totalorder %s93, %s96
      %p105 = scmp.eq.s32.totalorder %s20, 1
      %p106 = por %p104, %p105
      %p107 = scmp.ne.s32.totalorder %s96, %s97
      %p108 = scmp.eq.s32.totalorder %s20, 0
      %p109 = por %p107, %p108
      %p110 = scmp.ne.s32.totalorder %s96, %s97
      %p111 = scmp.eq.s32.totalorder %s21, 1
      %p112 = por %p110, %p111
      %p114 = scmp.ne.s32.totalorder %s97, %s113
      %p115 = scmp.eq.s32.totalorder %s21, 0
      %p116 = por %p114, %p115
      %p117 = scmp.le.s32.totalorder 1, %s15
      %p118 = scmp.lt.s32.totalorder %s15, 3
      %p119 = pnand %p117, %p118
      %p120 = pneg %p119
      // Predicated region
      $region9: #{tpu_custom_call.1} parent=5 // pred_check
        _
      $region10: #{tpu_custom_call.1} parent=5 // pred_check_branch
        %122 = sbr.rel (%p119) target = $region12
      $region11: #{tpu_custom_call.1} parent=5 // pred_region
        %s123 = ssub.s32 %s15, 1
        // Predicated region
        $region13: #{tpu_custom_call.1} parent=11 // pred_check
          %p124 = pneg %p62
        $region14: #{tpu_custom_call.1} parent=11 // pred_check_branch
          %126 = sbr.rel (%p124) target = $region16
        $region15: #{tpu_custom_call.1} parent=11 // pred_region
          _
        $region16: #{tpu_custom_call.1} parent=11 // pred_fallthru
          _
        // Predicated region
        $region17: #{tpu_custom_call.1} parent=11 // pred_check
          %p127 = pneg %p83
        $region18: #{tpu_custom_call.1} parent=11 // pred_check_branch
          %129 = sbr.rel (%p127) target = $region20
        $region19: #{tpu_custom_call.1} parent=11 // pred_region
          _
        $region20: #{tpu_custom_call.1} parent=11 // pred_fallthru
          _
      $region12: #{tpu_custom_call.1} parent=5 // pred_fallthru
        _
      %p130 = scmp.lt.s32.totalorder %s15, 2
      // Predicated region
      $region21: #{tpu_custom_call.1} parent=5 // pred_check
        %p131 = pneg %p130
      $region22: #{tpu_custom_call.1} parent=5 // pred_check_branch
        %133 = sbr.rel (%p131) target = $region24
      $region23: #{tpu_custom_call.1} parent=5 // pred_region
        // Predicated region
        $region25: #{tpu_custom_call.1} parent=23 // pred_check
          %p134 = pneg %p35
        $region26: #{tpu_custom_call.1} parent=23 // pred_check_branch
          %136 = sbr.rel (%p134) target = $region28
        $region27: #{tpu_custom_call.1} parent=23 // pred_region
          %s137 = sand.u32 %s25, 1
          %s138 = scalar_lea.sflag [#allocation3], %s137
          %s139 = sand.u32 %s25, 1
          %s140 = smul.addr %s139, 16
          %s141 = scalar_lea.vmem [#allocation2], %s140
          %s143 = ssub.s32 256, 256
          %144 = vsyncadd %s138, %s143
          %s145 = smul.addr %s15, 2
          %s146 = smul.addr %s145, 128
          %s147 = scalar_lea.hbm %s0, %s146
          %s149 = sshll.u32 %s141, 4
          %s150 = int_to_ptr.vmem [resolvable:$true] %s149
          %152 = dma.hbm_to_vmem [thread:$0]  %s147, 256, %s150, %s138
        $region28: #{tpu_custom_call.1} parent=23 // pred_fallthru
          _
      $region24: #{tpu_custom_call.1} parent=5 // pred_fallthru
        _
      %p153 = scmp.le.s32.totalorder 1, %s15
      %p154 = scmp.lt.s32.totalorder %s15, 3
      %p155 = pnand %p153, %p154
      %p156 = pneg %p155
      // Predicated region
      $region29: #{tpu_custom_call.1} parent=5 // pred_check
        _
      $region30: #{tpu_custom_call.1} parent=5 // pred_check_branch
        %158 = sbr.rel (%p155) target = $region32
      $region31: #{tpu_custom_call.1} parent=5 // pred_region
        %s159 = ssub.s32 %s15, 1
        %s160 = sand.u32 %s28, 1
        %s161 = scalar_lea.sflag [#allocation3], %s160
        %s162 = sand.u32 %s28, 1
        %s163 = smul.addr %s162, 16
        %s164 = scalar_lea.vmem [#allocation2], %s163
        // Predicated region
        $region33: #{tpu_custom_call.1} parent=31 // pred_check
          %p165 = pneg %p41
        $region34: #{tpu_custom_call.1} parent=31 // pred_check_branch
          %167 = sbr.rel (%p165) target = $region36
        $region35: #{tpu_custom_call.1} parent=31 // pred_region
          %168 = dma.done %s161, 256
        $region36: #{tpu_custom_call.1} parent=31 // pred_fallthru
          _
        %s169 = sand.u32 %s28, 1
        %s170 = scalar_lea.sflag [#allocation3], %s169
        %s171 = sand.u32 %s28, 1
        %s172 = smul.addr %s171, 16
        %s173 = scalar_lea.vmem [#allocation2], %s172
        %p174 = pneg %p41
        %p175 = pneg %p38
        %p176 = pneg %p62
        %p177 = pneg %p59
        %p178 = pneg %p83
        %p179 = pneg %p80
        %p180 = pneg %p109
        %p181 = pneg %p106
        %s182 = sand.u32 %s96, 1
        %s183 = scalar_lea.sflag [#allocation4], %s182
        %s184 = sand.u32 %s96, 1
        %s185 = smul.addr %s184, 16
        %s186 = scalar_lea.vmem [#allocation5], %s185
        %v187 = vld [vmem:[%s164] sm:$0xff]
        %188 = vmax.xlane.f32.xlu0 %v187
        %v189 = vpop.xlane.xlu0 %188
        %s190 = scalar_lea.vmem %s164, 8 [#allocation2]
        %v191 = vld [vmem:[%s190] sm:$0xff]
        %192 = vmax.xlane.f32.xlu0 %v191
        %v193 = vpop.xlane.xlu0 %192
        %v194 = vmax.f32 %v189, %v193
        %v195 = vld [vmem:[%s1] sm:$0xff]
        %v197 = vlaneseq
        %v198 = vand.u32 %v197, 127
        %v199 = vlaneseq
        %v200 = vshrl.u32 %v199, 7
        %v201 = vsub.s32 %v198, %v200
        %v202 = vrot.slane %v194, %v201
        %vm203 = vcmask 64512
        %v204 = vsel %vm203, %v202, 0
        %206 = vmatprep.subr.mxu0 0.0
        %207 = vmatpush1.msra.mxu0 0.0
        %208 = vmatprep.subr.mxu0 0.0
        %209 = vmatpush1.msra.mxu0 0.0
        %210 = vmatprep.subr.mxu0 0.0
        %211 = vmatpush1.msra.mxu0 0.0
        %212 = vmatprep.subr.mxu0 0.0
        %213 = vmatpush1.msra.mxu0 0.0
        %214 = vmatprep.subr.mxu0 0.0
        %215 = vmatpush1.msra.mxu0 0.0
        %216 = vmatprep.subr.mxu0 0.0
        %217 = vmatpush1.msra.mxu0 0.0
        %218 = vmatprep.subr.mxu0 0.0
        %219 = vmatpush1.msra.mxu0 0.0
        %220 = vmatprep.subr.mxu0 0.0
        %221 = vmatpush1.msra.mxu0 0.0
        %222 = vmatprep.subr.mxu0 0.0
        %223 = vmatpush1.msra.mxu0 0.0
        %224 = vmatprep.subr.mxu0 0.0
        %225 = vmatpush1.msra.mxu0 0.0
        %226 = vmatprep.subr.mxu0 0.0
        %227 = vmatpush1.msra.mxu0 0.0
        %228 = vmatprep.subr.mxu0 0.0
        %229 = vmatpush1.msra.mxu0 0.0
        %230 = vmatprep.subr.mxu0 0.0
        %231 = vmatpush1.msra.mxu0 0.0
        %232 = vmatprep.subr.mxu0 0.0
        %233 = vmatpush1.msra.mxu0 0.0
        %234 = vmatprep.subr.mxu0 0.0
        %235 = vmatpush1.msra.mxu0 0.0
        %236 = vmatprep.subr.mxu0 0.0
        %237 = vmatpush1.msra.mxu0 %v195
        %238 = vmatprep.subr.mxu0 0.0
        %239 = vmatpush2.msra.mxu0 0.0
        %240 = vmatprep.subr.mxu0 0.0
        %241 = vmatpush2.msra.mxu0 0.0
        %242 = vmatprep.subr.mxu0 0.0
        %243 = vmatpush2.msra.mxu0 0.0
        %244 = vmatprep.subr.mxu0 0.0
        %245 = vmatpush2.msra.mxu0 0.0
        %246 = vmatprep.subr.mxu0 0.0
        %247 = vmatpush2.msra.mxu0 0.0
        %248 = vmatprep.subr.mxu0 0.0
        %249 = vmatpush2.msra.mxu0 0.0
        %250 = vmatprep.subr.mxu0 0.0
        %251 = vmatpush2.msra.mxu0 0.0
        %252 = vmatprep.subr.mxu0 0.0
        %253 = vmatpush2.msra.mxu0 0.0
        %254 = vmatprep.subr.mxu0 0.0
        %255 = vmatpush2.msra.mxu0 0.0
        %256 = vmatprep.subr.mxu0 0.0
        %257 = vmatpush2.msra.mxu0 0.0
        %258 = vmatprep.subr.mxu0 0.0
        %259 = vmatpush2.msra.mxu0 0.0
        %260 = vmatprep.subr.mxu0 0.0
        %261 = vmatpush2.msra.mxu0 0.0
        %262 = vmatprep.subr.mxu0 0.0
        %263 = vmatpush2.msra.mxu0 0.0
        %264 = vmatprep.subr.mxu0 0.0
        %265 = vmatpush2.msra.mxu0 0.0
        %266 = vmatprep.subr.mxu0 0.0
        %267 = vmatpush2.msra.mxu0 0.0
        %268 = vmatprep.subr.mxu0 0.0
        %269 = vmatpush2.msra.mxu0 0.0
        %270 = vmatprep.mubr.f32.mxu0 0.0
        %271 = vmatmul.mubr.f32.gmra.mxu0 %v204
        %v272 = vpop.f32.mrf.mxu0
        %v273 = vadd.f32 0.0, %v272
        %v274 = vpop.f32.mrf.mxu0
        %275 = vdwg.mxu0
        %v276 = vmax.f32 %v273, 0.0
        %v277 = vld [vmem:[%s2] sm:$0x3]
        %vm278 = vcmask 15360
        %v280 = vsel %vm278, %v276, 0
        %vm282 = vcmask 1041408
        %v284 = vsel %vm282, %v277, 0
        %286 = vmatprep.subr.mxu0 0.0
        %287 = vmatpush1.msra.mxu0 0.0
        %288 = vmatprep.subr.mxu0 0.0
        %289 = vmatpush1.msra.mxu0 0.0
        %290 = vmatprep.subr.mxu0 0.0
        %291 = vmatpush1.msra.mxu0 0.0
        %292 = vmatprep.subr.mxu0 0.0
        %293 = vmatpush1.msra.mxu0 0.0
        %294 = vmatprep.subr.mxu0 0.0
        %295 = vmatpush1.msra.mxu0 0.0
        %296 = vmatprep.subr.mxu0 0.0
        %297 = vmatpush1.msra.mxu0 0.0
        %298 = vmatprep.subr.mxu0 0.0
        %299 = vmatpush1.msra.mxu0 0.0
        %300 = vmatprep.subr.mxu0 0.0
        %301 = vmatpush1.msra.mxu0 0.0
        %302 = vmatprep.subr.mxu0 0.0
        %303 = vmatpush1.msra.mxu0 0.0
        %304 = vmatprep.subr.mxu0 0.0
        %305 = vmatpush1.msra.mxu0 0.0
        %306 = vmatprep.subr.mxu0 0.0
        %307 = vmatpush1.msra.mxu0 0.0
        %308 = vmatprep.subr.mxu0 0.0
        %309 = vmatpush1.msra.mxu0 0.0
        %310 = vmatprep.subr.mxu0 0.0
        %311 = vmatpush1.msra.mxu0 0.0
        %312 = vmatprep.subr.mxu0 0.0
        %313 = vmatpush1.msra.mxu0 0.0
        %314 = vmatprep.subr.mxu0 0.0
        %315 = vmatpush1.msra.mxu0 0.0
        %316 = vmatprep.subr.mxu0 0.0
        %317 = vmatpush1.msra.mxu0 %v284
        %318 = vmatprep.subr.mxu0 0.0
        %319 = vmatpush2.msra.mxu0 0.0
        %320 = vmatprep.subr.mxu0 0.0
        %321 = vmatpush2.msra.mxu0 0.0
        %322 = vmatprep.subr.mxu0 0.0
        %323 = vmatpush2.msra.mxu0 0.0
        %324 = vmatprep.subr.mxu0 0.0
        %325 = vmatpush2.msra.mxu0 0.0
        %326 = vmatprep.subr.mxu0 0.0
        %327 = vmatpush2.msra.mxu0 0.0
        %328 = vmatprep.subr.mxu0 0.0
        %329 = vmatpush2.msra.mxu0 0.0
        %330 = vmatprep.subr.mxu0 0.0
        %331 = vmatpush2.msra.mxu0 0.0
        %332 = vmatprep.subr.mxu0 0.0
        %333 = vmatpush2.msra.mxu0 0.0
        %334 = vmatprep.subr.mxu0 0.0
        %335 = vmatpush2.msra.mxu0 0.0
        %336 = vmatprep.subr.mxu0 0.0
        %337 = vmatpush2.msra.mxu0 0.0
        %338 = vmatprep.subr.mxu0 0.0
        %339 = vmatpush2.msra.mxu0 0.0
        %340 = vmatprep.subr.mxu0 0.0
        %341 = vmatpush2.msra.mxu0 0.0
        %342 = vmatprep.subr.mxu0 0.0
        %343 = vmatpush2.msra.mxu0 0.0
        %344 = vmatprep.subr.mxu0 0.0
        %345 = vmatpush2.msra.mxu0 0.0
        %346 = vmatprep.subr.mxu0 0.0
        %347 = vmatpush2.msra.mxu0 0.0
        %348 = vmatprep.subr.mxu0 0.0
        %349 = vmatpush2.msra.mxu0 0.0
        %350 = vmatprep.mubr.f32.mxu0 0.0
        %351 = vmatmul.mubr.f32.gmra.mxu0 %v280
        %v352 = vpop.f32.mrf.mxu0
        %v353 = vadd.f32 0.0, %v352
        %v354 = vpop.f32.mrf.mxu0
        %355 = vdwg.mxu0
        %v356 = vxor.u32 %v353, 2147483648
        %v357 = vmul.f32 %v356, 1.442695
        %v358 = vpow.pop %v357
        %v359 = vadd.f32 %v358, 1.0
        %v360 = vrcp.pop %v359
        %v361 = vmul.f32 1.0, %v360
        %v362 = vlaneseq
        %v363 = vshrl.u32 %v362, 7
        %v364 = vsub.s32 0, %v363
        %v365 = vrot.slane %v361, %v364
        %367 = vbcast.lane.b32.xlu0 %v365, 256
        %v368 = vpop.permute.xlu0 %367
        %v369 = vmul.f32 %v187, %v368
        %370 = vst [vmem:[%s186] sm:$0xff] %v369
        %v371 = vld [vmem:[%s190] sm:$0xff]
        %v372 = vmul.f32 %v371, %v368
        %s373 = scalar_lea.vmem %s186, 8 [#allocation5]
        %374 = vst [vmem:[%s373] sm:$0xff] %v372
        %s375 = sand.u32 %s96, 1
        %s376 = scalar_lea.sflag [#allocation4], %s375
        %s377 = sand.u32 %s96, 1
        %s378 = smul.addr %s377, 16
        %s379 = scalar_lea.vmem [#allocation5], %s378
        // Predicated region
        $region37: #{tpu_custom_call.1} parent=31 // pred_check
          %p380 = pneg %p106
        $region38: #{tpu_custom_call.1} parent=31 // pred_check_branch
          %382 = sbr.rel (%p380) target = $region40
        $region39: #{tpu_custom_call.1} parent=31 // pred_region
          %s384 = ssub.s32 256, 256
          %385 = vsyncadd %s376, %s384
          %s386 = smul.addr %s20, 2
          %s387 = smul.addr %s386, 128
          %s388 = scalar_lea.hbm %s3, %s387
          %s390 = sshll.u32 %s379, 4
          %s391 = int_to_ptr.vmem [resolvable:$true] %s390
          %393 = dma.vmem_to_hbm [thread:$0]  %s391, 256, %s388, %s376
        $region40: #{tpu_custom_call.1} parent=31 // pred_fallthru
          _
      $region32: #{tpu_custom_call.1} parent=5 // pred_fallthru
        _
      %p394 = scmp.le.s32.totalorder 2, %s15
      // Predicated region
      $region41: #{tpu_custom_call.1} parent=5 // pred_check
        %p395 = pneg %p394
      $region42: #{tpu_custom_call.1} parent=5 // pred_check_branch
        %397 = sbr.rel (%p395) target = $region44
      $region43: #{tpu_custom_call.1} parent=5 // pred_region
        %s398 = ssub.s32 %s15, 2
        // Predicated region
        $region45: #{tpu_custom_call.1} parent=43 // pred_check
          %p399 = pneg %p112
        $region46: #{tpu_custom_call.1} parent=43 // pred_check_branch
          %401 = sbr.rel (%p399) target = $region48
        $region47: #{tpu_custom_call.1} parent=43 // pred_region
          %s402 = sand.u32 %s97, 1
          %s403 = scalar_lea.sflag [#allocation4], %s402
          %s404 = sand.u32 %s97, 1
          %s405 = smul.addr %s404, 16
          %s406 = scalar_lea.vmem [#allocation5], %s405
          %407 = dma.done %s403, 256
        $region48: #{tpu_custom_call.1} parent=43 // pred_fallthru
          _
      $region44: #{tpu_custom_call.1} parent=5 // pred_fallthru
        _
    $region6: #{tpu_custom_call.1} parent=1 // loop_footer
      %s19 = sadd.s32 1, %s15
    $region7: #{tpu_custom_call.1} parent=1 // loop_footer_branch
      %14 = sbr.rel target = $region3
    $region8: #{tpu_custom_call.1} parent=1 // loop_exit
      _
    %408 = vsyncpa [#allocation3], 1
    %s409 = scalar_lea.sflag [#allocation3], 1
    %410 = vsyncpa %s409, 1
    %411 = vsyncpa [#allocation4], 1
    %s412 = scalar_lea.sflag [#allocation4], 1
    %413 = vsyncpa %s412, 1

</llo_original>
